<compile_context>
chip_gen: v7x
topology: tpu7x:2x2x1
jax: 0.10.0
libtpu: 0.0.40
codegen_flags: <defaults>
</compile_context>

<pallas_src>
import functools

import jax
import jax.numpy as jnp
from jax import lax
from jax.experimental import pallas as pl
from jax.experimental.pallas import tpu as pltpu

_LANES = 128
_SUBLANES = 8
_NUM_CORE_SPLIT = 2  # leading "parallel" grid axis (v7x megacore); harmless elsewhere


def _local_index(shape3):
    """Flat element index within a (groups, 8, 128) tile view."""
    grp = lax.broadcasted_iota(jnp.int32, shape3, 0)
    sub = lax.broadcasted_iota(jnp.int32, shape3, 1)
    lane = lax.broadcasted_iota(jnp.int32, shape3, 2)
    return (grp * _SUBLANES + sub) * _LANES + lane


def _stats_kernel(yt_ref, yp_ref, stats_ref, *,
                  tile_rows, tiles_per_core, n_full_tiles, rem):
    """Pass 1: accumulate min/max/sum slabs for y_pred (slots 0..2) and y_true (3..5)."""
    c = pl.program_id(0)
    i = pl.program_id(1)
    g = tile_rows // _SUBLANES
    shape3 = (g, _SUBLANES, _LANES)

    @pl.when(i == 0)
    def _init():
        stats_ref[0] = jnp.full((_SUBLANES, _LANES), jnp.inf, jnp.float32)   # min(y_pred)
        stats_ref[1] = jnp.full((_SUBLANES, _LANES), -jnp.inf, jnp.float32)  # max(y_pred)
        stats_ref[2] = jnp.zeros((_SUBLANES, _LANES), jnp.float32)           # sum(y_pred)
        stats_ref[3] = jnp.full((_SUBLANES, _LANES), jnp.inf, jnp.float32)   # min(y_true)
        stats_ref[4] = jnp.full((_SUBLANES, _LANES), -jnp.inf, jnp.float32)  # max(y_true)
        stats_ref[5] = jnp.zeros((_SUBLANES, _LANES), jnp.float32)           # sum(y_true)

    def _accumulate(mask):
        yp = yp_ref[...].astype(jnp.float32).reshape(shape3)
        yt = yt_ref[...].astype(jnp.float32).reshape(shape3)
        if mask is None:
            yp_mn = yp_mx = yp_sm = yp
            yt_mn = yt_mx = yt_sm = yt
        else:
            yp_mn = jnp.where(mask, yp, jnp.inf)
            yp_mx = jnp.where(mask, yp, -jnp.inf)
            yp_sm = jnp.where(mask, yp, 0.0)
            yt_mn = jnp.where(mask, yt, jnp.inf)
            yt_mx = jnp.where(mask, yt, -jnp.inf)
            yt_sm = jnp.where(mask, yt, 0.0)
        # Pure VPU folds over the leading axis; final scalar reduce is in JAX.
        stats_ref[0] = jnp.minimum(stats_ref[0], jnp.min(yp_mn, axis=0))
        stats_ref[1] = jnp.maximum(stats_ref[1], jnp.max(yp_mx, axis=0))
        stats_ref[2] = stats_ref[2] + jnp.sum(yp_sm, axis=0)
        stats_ref[3] = jnp.minimum(stats_ref[3], jnp.min(yt_mn, axis=0))
        stats_ref[4] = jnp.maximum(stats_ref[4], jnp.max(yt_mx, axis=0))
        stats_ref[5] = stats_ref[5] + jnp.sum(yt_sm, axis=0)

    t = c * tiles_per_core + i  # logical (unclamped) tile index

    if n_full_tiles >= _NUM_CORE_SPLIT * tiles_per_core:
        _accumulate(None)  # every covered tile is fully valid
    else:
        @pl.when(t < n_full_tiles)
        def _full():
            _accumulate(None)

        if rem > 0:
            @pl.when(t == n_full_tiles)
            def _partial():
                _accumulate(_local_index(shape3) < rem)
        # tiles with t > n_full_tiles are entirely padding: contribute nothing.


def _minsum_kernel(coef_ref, yt_ref, yp_ref, acc_ref, *,
                   tile_rows, tiles_per_core, n_full_tiles, rem):
    """Pass 2: accumulate sum(min(scale_p*y_pred - shift_p, scale_t*y_true - shift_t))."""
    c = pl.program_id(0)
    i = pl.program_id(1)
    g = tile_rows // _SUBLANES
    shape3 = (g, _SUBLANES, _LANES)

    @pl.when(i == 0)
    def _init():
        acc_ref[...] = jnp.zeros((_SUBLANES, _LANES), jnp.float32)

    scale_p = coef_ref[0]
    shift_p = coef_ref[1]
    scale_t = coef_ref[2]
    shift_t = coef_ref[3]

    def _accumulate(mask):
        yp = yp_ref[...].astype(jnp.float32).reshape(shape3)
        yt = yt_ref[...].astype(jnp.float32).reshape(shape3)
        p = yp * scale_p - shift_p
        q = yt * scale_t - shift_t
        m = jnp.minimum(p, q)
        if mask is not None:
            m = jnp.where(mask, m, 0.0)
        acc_ref[...] = acc_ref[...] + jnp.sum(m, axis=0)

    t = c * tiles_per_core + i

    if n_full_tiles >= _NUM_CORE_SPLIT * tiles_per_core:
        _accumulate(None)
    else:
        @pl.when(t < n_full_tiles)
        def _full():
            _accumulate(None)

        if rem > 0:
            @pl.when(t == n_full_tiles)
            def _partial():
                _accumulate(_local_index(shape3) < rem)


def sim_loss(y_true, y_pred, *, tile_rows=1024):
    """Pallas TPU implementation of the PyTorch `sim` module forward."""
    assert y_true.shape == y_pred.shape
    n = int(y_pred.size)
    rows = -(-n // _LANES)
    pad = rows * _LANES - n

    # Flatten lane-major; stream native dtype (cast to f32 happens in-kernel).
    yt_flat = jnp.ravel(y_true)
    yp_flat = jnp.ravel(y_pred)
    if pad:
        yt_flat = jnp.pad(yt_flat, (0, pad))
        yp_flat = jnp.pad(yp_flat, (0, pad))
    yt2 = yt_flat.reshape(rows, _LANES)
    yp2 = yp_flat.reshape(rows, _LANES)

    # Row tile: multiple of 8 sublanes, shrunk for tiny inputs (1-step grid).
    rows_up8 = -(-rows // _SUBLANES) * _SUBLANES
    tr = max(_SUBLANES, min((int(tile_rows) // _SUBLANES) * _SUBLANES, rows_up8))

    num_row_tiles = -(-rows // tr)
    tiles_per_core = -(-num_row_tiles // _NUM_CORE_SPLIT)
    tile_elems = tr * _LANES
    n_full_tiles = n // tile_elems        # tiles entirely inside the valid range
    rem = n - n_full_tiles * tile_elems   # valid elements in the boundary tile

    # Clamp the block index so tiles that are pure padding re-read a valid
    # block (their contribution is skipped in-kernel), keeping DMAs in bounds.
    def in_index(c, i):
        return (jnp.minimum(c * tiles_per_core + i, num_row_tiles - 1), 0)

    grid = (_NUM_CORE_SPLIT, tiles_per_core)
    data_spec = pl.BlockSpec((tr, _LANES), in_index)
    cparams = pltpu.CompilerParams(
        dimension_semantics=("parallel", "arbitrary"),
        vmem_limit_bytes=32 * 1024 * 1024)
    static = dict(tile_rows=tr, tiles_per_core=tiles_per_core,
                  n_full_tiles=n_full_tiles, rem=rem)

    # ---- pass 1: per-tensor min / max / sum --------------------------------
    stats = pl.pallas_call(
        functools.partial(_stats_kernel, **static),
        out_shape=jax.ShapeDtypeStruct(
            (_NUM_CORE_SPLIT, 6, _SUBLANES, _LANES), jnp.float32),
        grid_spec=pltpu.PrefetchScalarGridSpec(
            num_scalar_prefetch=0,
            grid=grid,
            in_specs=[data_spec, data_spec],
            out_specs=pl.BlockSpec((None, 6, _SUBLANES, _LANES),
                                   lambda c, i: (c, 0, 0, 0)),
        ),
        compiler_params=cparams,
    )(yt2, yp2)

    min_p = jnp.min(stats[:, 0])
    max_p = jnp.max(stats[:, 1])
    sum_p = jnp.sum(stats[:, 2])
    min_t = jnp.min(stats[:, 3])
    max_t = jnp.max(stats[:, 4])
    sum_t = jnp.sum(stats[:, 5])

    eps = jnp.float32(1e-10)
    nf = jnp.float32(n)

    range_p = max_p - min_p + eps
    sum_P = (sum_p - nf * min_p) / range_p          # == sum((y_pred - min)/range)
    scale_p = 1.0 / (range_p * (sum_P + eps))
    shift_p = min_p * scale_p                       # P_norm = y_pred*scale_p - shift_p

    range_t = max_t - min_t + eps
    sum_Q = (sum_t - nf * min_t) / range_t
    scale_t = 1.0 / (range_t * (sum_Q + eps))
    shift_t = min_t * scale_t                       # Q_norm = y_true*scale_t - shift_t

    coef = jnp.stack([scale_p, shift_p, scale_t, shift_t]).astype(jnp.float32)

    # ---- pass 2: sum(min(P_norm, Q_norm)) ----------------------------------
    acc = pl.pallas_call(
        functools.partial(_minsum_kernel, **static),
        out_shape=jax.ShapeDtypeStruct(
            (_NUM_CORE_SPLIT, _SUBLANES, _LANES), jnp.float32),
        grid_spec=pltpu.PrefetchScalarGridSpec(
            num_scalar_prefetch=0,
            grid=grid,
            in_specs=[pl.BlockSpec(memory_space=pltpu.MemorySpace.SMEM),
                      data_spec, data_spec],
            out_specs=pl.BlockSpec((None, _SUBLANES, _LANES),
                                   lambda c, i: (c, 0, 0)),
        ),
        compiler_params=cparams,
    )(coef, yt2, yp2)

    return jnp.sum(acc)


def _sim_reference(y_true, y_pred):
    """Pure-JAX reference matching the PyTorch forward exactly."""
    eps = 1e-10
    P = (y_pred - jnp.min(y_pred)) / (jnp.max(y_pred) - jnp.min(y_pred) + eps)
    P = P / (jnp.sum(P) + eps)
    Q = (y_true - jnp.min(y_true)) / (jnp.max(y_true) - jnp.min(y_true) + eps)
    Q = Q / (jnp.sum(Q) + eps)
    return jnp.sum(jnp.minimum(P, Q))


if __name__ == "__main__":
    key = jax.random.PRNGKey(0)
    k1, k2 = jax.random.split(key)
    # saliency-map-like inputs: batch=2, channels=4, spatial=16x16 (NCHW)
    shape = (2, 4, 16, 16)
    y_true = jax.random.uniform(k1, shape, dtype=jnp.float32)
    y_pred = jax.random.uniform(k2, shape, dtype=jnp.float32)

    loss = sim_loss(y_true, y_pred)
    loss = jax.block_until_ready(loss)

    ref = _sim_reference(y_true, y_pred)
    assert jnp.allclose(loss, ref, rtol=1e-4, atol=1e-6), (loss, ref)

    print("KERNEL_OK")
</pallas_src>

<mosaic_0001>
module attributes {stable_mosaic.version = 11 : i64} {
  func.func @_stats_kernel(%arg0: i32, %arg1: i32, %arg2: memref<16x128xf32, #tpu.memory_space<vmem>>, %arg3: memref<16x128xf32, #tpu.memory_space<vmem>>, %arg4: memref<1x6x8x128xf32, #tpu.memory_space<vmem>>) attributes {dimension_semantics = [#tpu.dimension_semantics<parallel>, #tpu.dimension_semantics<arbitrary>], iteration_bounds = array<i64: 2, 1>, scalar_prefetch = 0 : i64, scratch_operands = 0 : i64, tpu.core_type = #tpu.core_type<tc>, window_params = [{transform_indices = @transform_0, window_bounds = array<i64: 16, 128>}, {transform_indices = @transform_1, window_bounds = array<i64: 16, 128>}, {transform_indices = @transform_2, window_bounds = array<i64: 1, 6, 8, 128>}]} {
    %c0_i32 = arith.constant 0 : i32
    %0 = arith.cmpi eq, %arg1, %c0_i32 : i32
    %1 = arith.extui %0 : i1 to i32
    %c0_i32_0 = arith.constant 0 : i32
    %2 = arith.cmpi ne, %1, %c0_i32_0 : i32
    scf.if %2 {
      %cst = arith.constant 0x7F800000 : f32
      %8 = vector.broadcast %cst : f32 to vector<8x128xf32>
      %c0 = arith.constant 0 : index
      %c0_3 = arith.constant 0 : index
      %c0_4 = arith.constant 0 : index
      %c0_5 = arith.constant 0 : index
      %9 = vector.load %arg4[%c0, %c0_3, %c0_4, %c0_5] : memref<1x6x8x128xf32, #tpu.memory_space<vmem>>, vector<1x1x8x128xf32>
      %10 = vector.shape_cast %9 : vector<1x1x8x128xf32> to vector<8x128xf32>
      %11 = vector.shape_cast %8 : vector<8x128xf32> to vector<1x1x8x128xf32>
      tpu.vector_store %arg4[%c0, %c0_3, %c0_4, %c0_5], %11 {strides = array<i32>} : memref<1x6x8x128xf32, #tpu.memory_space<vmem>>, vector<1x1x8x128xf32>,
      %cst_6 = arith.constant 0xFF800000 : f32
      %12 = vector.broadcast %cst_6 : f32 to vector<8x128xf32>
      %c0_7 = arith.constant 0 : index
      %c1 = arith.constant 1 : index
      %c0_8 = arith.constant 0 : index
      %c0_9 = arith.constant 0 : index
      %13 = vector.load %arg4[%c0_7, %c1, %c0_8, %c0_9] : memref<1x6x8x128xf32, #tpu.memory_space<vmem>>, vector<1x1x8x128xf32>
      %14 = vector.shape_cast %13 : vector<1x1x8x128xf32> to vector<8x128xf32>
      %15 = vector.shape_cast %12 : vector<8x128xf32> to vector<1x1x8x128xf32>
      tpu.vector_store %arg4[%c0_7, %c1, %c0_8, %c0_9], %15 {strides = array<i32>} : memref<1x6x8x128xf32, #tpu.memory_space<vmem>>, vector<1x1x8x128xf32>,
      %cst_10 = arith.constant 0.000000e+00 : f32
      %16 = vector.broadcast %cst_10 : f32 to vector<8x128xf32>
      %c0_11 = arith.constant 0 : index
      %c2 = arith.constant 2 : index
      %c0_12 = arith.constant 0 : index
      %c0_13 = arith.constant 0 : index
      %17 = vector.load %arg4[%c0_11, %c2, %c0_12, %c0_13] : memref<1x6x8x128xf32, #tpu.memory_space<vmem>>, vector<1x1x8x128xf32>
      %18 = vector.shape_cast %17 : vector<1x1x8x128xf32> to vector<8x128xf32>
      %19 = vector.shape_cast %16 : vector<8x128xf32> to vector<1x1x8x128xf32>
      tpu.vector_store %arg4[%c0_11, %c2, %c0_12, %c0_13], %19 {strides = array<i32>} : memref<1x6x8x128xf32, #tpu.memory_space<vmem>>, vector<1x1x8x128xf32>,
      %cst_14 = arith.constant 0x7F800000 : f32
      %20 = vector.broadcast %cst_14 : f32 to vector<8x128xf32>
      %c0_15 = arith.constant 0 : index
      %c3 = arith.constant 3 : index
      %c0_16 = arith.constant 0 : index
      %c0_17 = arith.constant 0 : index
      %21 = vector.load %arg4[%c0_15, %c3, %c0_16, %c0_17] : memref<1x6x8x128xf32, #tpu.memory_space<vmem>>, vector<1x1x8x128xf32>
      %22 = vector.shape_cast %21 : vector<1x1x8x128xf32> to vector<8x128xf32>
      %23 = vector.shape_cast %20 : vector<8x128xf32> to vector<1x1x8x128xf32>
      tpu.vector_store %arg4[%c0_15, %c3, %c0_16, %c0_17], %23 {strides = array<i32>} : memref<1x6x8x128xf32, #tpu.memory_space<vmem>>, vector<1x1x8x128xf32>,
      %cst_18 = arith.constant 0xFF800000 : f32
      %24 = vector.broadcast %cst_18 : f32 to vector<8x128xf32>
      %c0_19 = arith.constant 0 : index
      %c4 = arith.constant 4 : index
      %c0_20 = arith.constant 0 : index
      %c0_21 = arith.constant 0 : index
      %25 = vector.load %arg4[%c0_19, %c4, %c0_20, %c0_21] : memref<1x6x8x128xf32, #tpu.memory_space<vmem>>, vector<1x1x8x128xf32>
      %26 = vector.shape_cast %25 : vector<1x1x8x128xf32> to vector<8x128xf32>
      %27 = vector.shape_cast %24 : vector<8x128xf32> to vector<1x1x8x128xf32>
      tpu.vector_store %arg4[%c0_19, %c4, %c0_20, %c0_21], %27 {strides = array<i32>} : memref<1x6x8x128xf32, #tpu.memory_space<vmem>>, vector<1x1x8x128xf32>,
      %cst_22 = arith.constant 0.000000e+00 : f32
      %28 = vector.broadcast %cst_22 : f32 to vector<8x128xf32>
      %c0_23 = arith.constant 0 : index
      %c5 = arith.constant 5 : index
      %c0_24 = arith.constant 0 : index
      %c0_25 = arith.constant 0 : index
      %29 = vector.load %arg4[%c0_23, %c5, %c0_24, %c0_25] : memref<1x6x8x128xf32, #tpu.memory_space<vmem>>, vector<1x1x8x128xf32>
      %30 = vector.shape_cast %29 : vector<1x1x8x128xf32> to vector<8x128xf32>
      %31 = vector.shape_cast %28 : vector<8x128xf32> to vector<1x1x8x128xf32>
      tpu.vector_store %arg4[%c0_23, %c5, %c0_24, %c0_25], %31 {strides = array<i32>} : memref<1x6x8x128xf32, #tpu.memory_space<vmem>>, vector<1x1x8x128xf32>,
    } else {
    }
    %c1_i32 = arith.constant 1 : i32
    %3 = arith.muli %arg0, %c1_i32 : i32
    %4 = arith.addi %3, %arg1 : i32
    %c1_i32_1 = arith.constant 1 : i32
    %5 = arith.cmpi slt, %4, %c1_i32_1 : i32
    %6 = arith.extui %5 : i1 to i32
    %c0_i32_2 = arith.constant 0 : i32
    %7 = arith.cmpi ne, %6, %c0_i32_2 : i32
    scf.if %7 {
      %c0 = arith.constant 0 : index
      %c0_3 = arith.constant 0 : index
      %8 = vector.load %arg3[%c0, %c0_3] : memref<16x128xf32, #tpu.memory_space<vmem>>, vector<16x128xf32>
      %9 = vector.shape_cast %8 : vector<16x128xf32> to vector<2x8x128xf32>
      %c0_4 = arith.constant 0 : index
      %c0_5 = arith.constant 0 : index
      %10 = vector.load %arg2[%c0_4, %c0_5] : memref<16x128xf32, #tpu.memory_space<vmem>>, vector<16x128xf32>
      %11 = vector.shape_cast %10 : vector<16x128xf32> to vector<2x8x128xf32>
      %c0_6 = arith.constant 0 : index
      %c0_7 = arith.constant 0 : index
      %c0_8 = arith.constant 0 : index
      %c0_9 = arith.constant 0 : index
      %12 = vector.load %arg4[%c0_6, %c0_7, %c0_8, %c0_9] : memref<1x6x8x128xf32, #tpu.memory_space<vmem>>, vector<1x1x8x128xf32>
      %13 = vector.shape_cast %12 : vector<1x1x8x128xf32> to vector<8x128xf32>
      %cst = arith.constant dense<0x7F800000> : vector<8x128xf32>
      %14 = vector.multi_reduction <minimumf>, %9, %cst [0] : vector<2x8x128xf32> to vector<8x128xf32>
      %15 = arith.minimumf %13, %14 : vector<8x128xf32>
      %c0_10 = arith.constant 0 : index
      %c0_11 = arith.constant 0 : index
      %c0_12 = arith.constant 0 : index
      %c0_13 = arith.constant 0 : index
      %16 = vector.load %arg4[%c0_10, %c0_11, %c0_12, %c0_13] : memref<1x6x8x128xf32, #tpu.memory_space<vmem>>, vector<1x1x8x128xf32>
      %17 = vector.shape_cast %16 : vector<1x1x8x128xf32> to vector<8x128xf32>
      %18 = vector.shape_cast %15 : vector<8x128xf32> to vector<1x1x8x128xf32>
      tpu.vector_store %arg4[%c0_10, %c0_11, %c0_12, %c0_13], %18 {strides = array<i32>} : memref<1x6x8x128xf32, #tpu.memory_space<vmem>>, vector<1x1x8x128xf32>,
      %c0_14 = arith.constant 0 : index
      %c1 = arith.constant 1 : index
      %c0_15 = arith.constant 0 : index
      %c0_16 = arith.constant 0 : index
      %19 = vector.load %arg4[%c0_14, %c1, %c0_15, %c0_16] : memref<1x6x8x128xf32, #tpu.memory_space<vmem>>, vector<1x1x8x128xf32>
      %20 = vector.shape_cast %19 : vector<1x1x8x128xf32> to vector<8x128xf32>
      %cst_17 = arith.constant dense<0xFF800000> : vector<8x128xf32>
      %21 = vector.multi_reduction <maximumf>, %9, %cst_17 [0] : vector<2x8x128xf32> to vector<8x128xf32>
      %22 = arith.maximumf %20, %21 : vector<8x128xf32>
      %c0_18 = arith.constant 0 : index
      %c1_19 = arith.constant 1 : index
      %c0_20 = arith.constant 0 : index
      %c0_21 = arith.constant 0 : index
      %23 = vector.load %arg4[%c0_18, %c1_19, %c0_20, %c0_21] : memref<1x6x8x128xf32, #tpu.memory_space<vmem>>, vector<1x1x8x128xf32>
      %24 = vector.shape_cast %23 : vector<1x1x8x128xf32> to vector<8x128xf32>
      %25 = vector.shape_cast %22 : vector<8x128xf32> to vector<1x1x8x128xf32>
      tpu.vector_store %arg4[%c0_18, %c1_19, %c0_20, %c0_21], %25 {strides = array<i32>} : memref<1x6x8x128xf32, #tpu.memory_space<vmem>>, vector<1x1x8x128xf32>,
      %c0_22 = arith.constant 0 : index
      %c2 = arith.constant 2 : index
      %c0_23 = arith.constant 0 : index
      %c0_24 = arith.constant 0 : index
      %26 = vector.load %arg4[%c0_22, %c2, %c0_23, %c0_24] : memref<1x6x8x128xf32, #tpu.memory_space<vmem>>, vector<1x1x8x128xf32>
      %27 = vector.shape_cast %26 : vector<1x1x8x128xf32> to vector<8x128xf32>
      %cst_25 = arith.constant dense<0.000000e+00> : vector<8x128xf32>
      %28 = vector.multi_reduction <add>, %9, %cst_25 [0] : vector<2x8x128xf32> to vector<8x128xf32>
      %29 = arith.addf %27, %28 : vector<8x128xf32>
      %c0_26 = arith.constant 0 : index
      %c2_27 = arith.constant 2 : index
      %c0_28 = arith.constant 0 : index
      %c0_29 = arith.constant 0 : index
      %30 = vector.load %arg4[%c0_26, %c2_27, %c0_28, %c0_29] : memref<1x6x8x128xf32, #tpu.memory_space<vmem>>, vector<1x1x8x128xf32>
      %31 = vector.shape_cast %30 : vector<1x1x8x128xf32> to vector<8x128xf32>
      %32 = vector.shape_cast %29 : vector<8x128xf32> to vector<1x1x8x128xf32>
      tpu.vector_store %arg4[%c0_26, %c2_27, %c0_28, %c0_29], %32 {strides = array<i32>} : memref<1x6x8x128xf32, #tpu.memory_space<vmem>>, vector<1x1x8x128xf32>,
      %c0_30 = arith.constant 0 : index
      %c3 = arith.constant 3 : index
      %c0_31 = arith.constant 0 : index
      %c0_32 = arith.constant 0 : index
      %33 = vector.load %arg4[%c0_30, %c3, %c0_31, %c0_32] : memref<1x6x8x128xf32, #tpu.memory_space<vmem>>, vector<1x1x8x128xf32>
      %34 = vector.shape_cast %33 : vector<1x1x8x128xf32> to vector<8x128xf32>
      %cst_33 = arith.constant dense<0x7F800000> : vector<8x128xf32>
      %35 = vector.multi_reduction <minimumf>, %11, %cst_33 [0] : vector<2x8x128xf32> to vector<8x128xf32>
      %36 = arith.minimumf %34, %35 : vector<8x128xf32>
      %c0_34 = arith.constant 0 : index
      %c3_35 = arith.constant 3 : index
      %c0_36 = arith.constant 0 : index
      %c0_37 = arith.constant 0 : index
      %37 = vector.load %arg4[%c0_34, %c3_35, %c0_36, %c0_37] : memref<1x6x8x128xf32, #tpu.memory_space<vmem>>, vector<1x1x8x128xf32>
      %38 = vector.shape_cast %37 : vector<1x1x8x128xf32> to vector<8x128xf32>
      %39 = vector.shape_cast %36 : vector<8x128xf32> to vector<1x1x8x128xf32>
      tpu.vector_store %arg4[%c0_34, %c3_35, %c0_36, %c0_37], %39 {strides = array<i32>} : memref<1x6x8x128xf32, #tpu.memory_space<vmem>>, vector<1x1x8x128xf32>,
      %c0_38 = arith.constant 0 : index
      %c4 = arith.constant 4 : index
      %c0_39 = arith.constant 0 : index
      %c0_40 = arith.constant 0 : index
      %40 = vector.load %arg4[%c0_38, %c4, %c0_39, %c0_40] : memref<1x6x8x128xf32, #tpu.memory_space<vmem>>, vector<1x1x8x128xf32>
      %41 = vector.shape_cast %40 : vector<1x1x8x128xf32> to vector<8x128xf32>
      %cst_41 = arith.constant dense<0xFF800000> : vector<8x128xf32>
      %42 = vector.multi_reduction <maximumf>, %11, %cst_41 [0] : vector<2x8x128xf32> to vector<8x128xf32>
      %43 = arith.maximumf %41, %42 : vector<8x128xf32>
      %c0_42 = arith.constant 0 : index
      %c4_43 = arith.constant 4 : index
      %c0_44 = arith.constant 0 : index
      %c0_45 = arith.constant 0 : index
      %44 = vector.load %arg4[%c0_42, %c4_43, %c0_44, %c0_45] : memref<1x6x8x128xf32, #tpu.memory_space<vmem>>, vector<1x1x8x128xf32>
      %45 = vector.shape_cast %44 : vector<1x1x8x128xf32> to vector<8x128xf32>
      %46 = vector.shape_cast %43 : vector<8x128xf32> to vector<1x1x8x128xf32>
      tpu.vector_store %arg4[%c0_42, %c4_43, %c0_44, %c0_45], %46 {strides = array<i32>} : memref<1x6x8x128xf32, #tpu.memory_space<vmem>>, vector<1x1x8x128xf32>,
      %c0_46 = arith.constant 0 : index
      %c5 = arith.constant 5 : index
      %c0_47 = arith.constant 0 : index
      %c0_48 = arith.constant 0 : index
      %47 = vector.load %arg4[%c0_46, %c5, %c0_47, %c0_48] : memref<1x6x8x128xf32, #tpu.memory_space<vmem>>, vector<1x1x8x128xf32>
      %48 = vector.shape_cast %47 : vector<1x1x8x128xf32> to vector<8x128xf32>
      %cst_49 = arith.constant dense<0.000000e+00> : vector<8x128xf32>
      %49 = vector.multi_reduction <add>, %11, %cst_49 [0] : vector<2x8x128xf32> to vector<8x128xf32>
      %50 = arith.addf %48, %49 : vector<8x128xf32>
      %c0_50 = arith.constant 0 : index
      %c5_51 = arith.constant 5 : index
      %c0_52 = arith.constant 0 : index
      %c0_53 = arith.constant 0 : index
      %51 = vector.load %arg4[%c0_50, %c5_51, %c0_52, %c0_53] : memref<1x6x8x128xf32, #tpu.memory_space<vmem>>, vector<1x1x8x128xf32>
      %52 = vector.shape_cast %51 : vector<1x1x8x128xf32> to vector<8x128xf32>
      %53 = vector.shape_cast %50 : vector<8x128xf32> to vector<1x1x8x128xf32>
      tpu.vector_store %arg4[%c0_50, %c5_51, %c0_52, %c0_53], %53 {strides = array<i32>} : memref<1x6x8x128xf32, #tpu.memory_space<vmem>>, vector<1x1x8x128xf32>,
    } else {
    }
    return
  }
  func.func @transform_0(%arg0: i32, %arg1: i32) -> (i32, i32) {
    %c1_i32 = arith.constant 1 : i32
    %0 = arith.muli %arg0, %c1_i32 : i32
    %1 = arith.addi %0, %arg1 : i32
    %c0_i32 = arith.constant 0 : i32
    %2 = arith.minsi %1, %c0_i32 : i32
    %c0_i32_0 = arith.constant 0 : i32
    %c0_i32_1 = arith.constant 0 : i32
    return %2, %c0_i32_0 : i32, i32
  }
  func.func @transform_1(%arg0: i32, %arg1: i32) -> (i32, i32) {
    %c1_i32 = arith.constant 1 : i32
    %0 = arith.muli %arg0, %c1_i32 : i32
    %1 = arith.addi %0, %arg1 : i32
    %c0_i32 = arith.constant 0 : i32
    %2 = arith.minsi %1, %c0_i32 : i32
    %c0_i32_0 = arith.constant 0 : i32
    %c0_i32_1 = arith.constant 0 : i32
    return %2, %c0_i32_0 : i32, i32
  }
  func.func @transform_2(%arg0: i32, %arg1: i32) -> (i32, i32, i32, i32) {
    %c0_i32 = arith.constant 0 : i32
    %c0_i32_0 = arith.constant 0 : i32
    %c0_i32_1 = arith.constant 0 : i32
    %c0_i32_2 = arith.constant 0 : i32
    return %arg0, %c0_i32, %c0_i32_0, %c0_i32_1 : i32, i32, i32, i32
  }
}

</mosaic_0001>

<llo_original>
// kernel: tpu_custom_call.1
$region0: #{tpu_custom_call.1}
  #allocation0 [shape = 'u32[]', space=smem, size = 0x4, offset = 0x4, fixed_abs, tag = 'smem constant byte address 0x4 - core index']
  #allocation1 [shape = 'u32[144,128]{1,0:T(1,128)}', space=vmem, size = 0x12000, scoped, tag = 'internal scratch']
  %s0 = inlined_call_operand.hbm [shape: f32[16,128], index: 0, kind: input, shape index: {}]
  %s1 = inlined_call_operand.hbm [shape: f32[16,128], index: 1, kind: input, shape index: {}]
  %s2 = inlined_call_operand.hbm [shape: f32[2,6,8,128], index: 2, kind: output, shape index: {}]
  %s3 = sld [smem:[#allocation0]]
  $region57: #{tpu_custom_call.1} parent=0
    _
  %s5 = ssub.s32 1, %s3
  %s6 = scalar_select 0, %s5, %s3
  $region1: #{tpu_custom_call.1} parent=0
    #allocation2 [shape = 'u8[16384]{0}', space=vmem, size = 0x4000, scoped, tag = 'input window, operand 0']
    #allocation3 [shape = 's32[2]{0}', space=sflag, size = 0x8, scoped, tag = 'scoped memory for tpu_custom_call.1']
    #allocation4 [shape = 's32[2]{0}', space=sflag, size = 0x8, scoped, tag = 'scoped memory for tpu_custom_call.1']
    #allocation5 [shape = 'u8[16384]{0}', space=vmem, size = 0x4000, scoped, tag = 'input window, operand 1']
    #allocation6 [shape = 's32[2]{0}', space=sflag, size = 0x8, scoped, tag = 'scoped memory for tpu_custom_call.1']
    #allocation7 [shape = 'u8[49152]{0}', space=vmem, size = 0xc000, scoped, tag = 'output window, operand 0']
    %7 = vsyncpa [#allocation3], 0
    %s8 = scalar_lea.sflag [#allocation3], 1
    %9 = vsyncpa %s8, 0
    %10 = vsyncpa [#allocation6], 0
    %s11 = scalar_lea.sflag [#allocation6], 1
    %12 = vsyncpa %s11, 0
    %13 = vsyncpa [#allocation4], 0
    %s14 = scalar_lea.sflag [#allocation4], 1
    %15 = vsyncpa %s14, 0
    loop: start=0, step=1, limit=4
    $region2: #{tpu_custom_call.1} parent=1 // loop_pre_header
      _
    $region3: #{tpu_custom_call.1} parent=1 // loop_header
      %s17 = sphi 0, %s21
      %p18 = scmp.ge.s32.totalorder %s17, 4
      %s24 = sphi 0, %s36
      %s25 = sphi 0, %s32
      %s26 = sphi 0, %s24
      %s27 = sphi 0, %s25
      %s28 = sphi 0, %s26
      %s29 = sphi 0, %s27
      %s45 = sphi 0, %s47
      %s48 = sphi 0, %s45
      %s49 = sphi 0, %s48
      %s65 = sphi 0, %s49
      %s77 = sphi 0, %s79
      %s80 = sphi 0, %s77
      %s81 = sphi 0, %s80
      %s97 = sphi 0, %s81
      %s103 = sphi 0, %s105
      %s106 = sphi 0, %s103
      %s107 = sphi 0, %s106
      %s123 = sphi 0, %s107
    $region4: #{tpu_custom_call.1} parent=1 // loop_header_branch
      %20 = sbr.rel (%p18) target = $region8
    $region5: #{tpu_custom_call.1} parent=1 // loop_body
      %s22 = ssub.s32 %s17, 1
      %s23 = ssub.s32 %s17, 2
      %s30 = sadd.s32 1, %s25
      %p31 = scmp.ge.s32.totalorder %s30, 1
      %s32 = scalar_select %p31, 0, %s30
      %s33 = sadd.s32 1, %s24
      %s34 = scalar_select %p31, %s33, %s24
      %p35 = scmp.ge.s32.totalorder %s34, 2
      %s36 = scalar_select %p35, 0, %s34
      %s37 = sadd.s32 %s24, %s25
      %p38 = scmp.lt.s32.totalorder %s37, 0
      %s39 = scalar_select %p38, %s37, 0
      %s40 = sadd.s32 %s36, %s32
      %p41 = scmp.lt.s32.totalorder %s40, 0
      %s42 = scalar_select %p41, %s40, 0
      %s43 = ssub.s32 %s39, %s42
      %p44 = scmp.eq.s32.totalorder %s43, 0
      %s46 = sadd.s32 %s45, 1
      %s47 = scalar_select %p44, %s45, %s46
      %p50 = pneg %p44
      %p51 = scmp.eq.s32.totalorder %s17, 1
      %p52 = por %p50, %p51
      %p53 = scmp.ne.s32.totalorder %s45, %s48
      %p54 = scmp.eq.s32.totalorder %s17, 0
      %p55 = por %p53, %p54
      %p56 = scmp.ne.s32.totalorder %s45, %s48
      %p57 = scmp.eq.s32.totalorder %s22, 1
      %p58 = por %p56, %p57
      %p59 = scmp.ne.s32.totalorder %s48, %s49
      %p60 = scmp.eq.s32.totalorder %s22, 0
      %p61 = por %p59, %p60
      %p62 = scmp.ne.s32.totalorder %s48, %s49
      %p63 = scmp.eq.s32.totalorder %s23, 1
      %p64 = por %p62, %p63
      %p66 = scmp.ne.s32.totalorder %s49, %s65
      %p67 = scmp.eq.s32.totalorder %s23, 0
      %p68 = por %p66, %p67
      %s69 = sadd.s32 %s24, %s25
      %p70 = scmp.lt.s32.totalorder %s69, 0
      %s71 = scalar_select %p70, %s69, 0
      %s72 = sadd.s32 %s36, %s32
      %p73 = scmp.lt.s32.totalorder %s72, 0
      %s74 = scalar_select %p73, %s72, 0
      %s75 = ssub.s32 %s71, %s74
      %p76 = scmp.eq.s32.totalorder %s75, 0
      %s78 = sadd.s32 %s77, 1
      %s79 = scalar_select %p76, %s77, %s78
      %p82 = pneg %p76
      %p83 = scmp.eq.s32.totalorder %s17, 1
      %p84 = por %p82, %p83
      %p85 = scmp.ne.s32.totalorder %s77, %s80
      %p86 = scmp.eq.s32.totalorder %s17, 0
      %p87 = por %p85, %p86
      %p88 = scmp.ne.s32.totalorder %s77, %s80
      %p89 = scmp.eq.s32.totalorder %s22, 1
      %p90 = por %p88, %p89
      %p91 = scmp.ne.s32.totalorder %s80, %s81
      %p92 = scmp.eq.s32.totalorder %s22, 0
      %p93 = por %p91, %p92
      %p94 = scmp.ne.s32.totalorder %s80, %s81
      %p95 = scmp.eq.s32.totalorder %s23, 1
      %p96 = por %p94, %p95
      %p98 = scmp.ne.s32.totalorder %s81, %s97
      %p99 = scmp.eq.s32.totalorder %s23, 0
      %p100 = por %p98, %p99
      %s101 = ssub.s32 %s24, %s36
      %p102 = scmp.eq.s32.totalorder %s101, 0
      %s104 = sadd.s32 %s103, 1
      %s105 = scalar_select %p102, %s103, %s104
      %p108 = pneg %p102
      %p109 = scmp.eq.s32.totalorder %s17, 1
      %p110 = por %p108, %p109
      %p111 = scmp.ne.s32.totalorder %s103, %s106
      %p112 = scmp.eq.s32.totalorder %s17, 0
      %p113 = por %p111, %p112
      %p114 = scmp.ne.s32.totalorder %s103, %s106
      %p115 = scmp.eq.s32.totalorder %s22, 1
      %p116 = por %p114, %p115
      %p117 = scmp.ne.s32.totalorder %s106, %s107
      %p118 = scmp.eq.s32.totalorder %s22, 0
      %p119 = por %p117, %p118
      %p120 = scmp.ne.s32.totalorder %s106, %s107
      %p121 = scmp.eq.s32.totalorder %s23, 1
      %p122 = por %p120, %p121
      %p124 = scmp.ne.s32.totalorder %s107, %s123
      %p125 = scmp.eq.s32.totalorder %s23, 0
      %p126 = por %p124, %p125
      %p127 = scmp.le.s32.totalorder 1, %s17
      %p128 = scmp.lt.s32.totalorder %s17, 3
      %p129 = pnand %p127, %p128
      %p130 = pneg %p129
      // Predicated region
      $region9: #{tpu_custom_call.1} parent=5 // pred_check
        _
      $region10: #{tpu_custom_call.1} parent=5 // pred_check_branch
        %132 = sbr.rel (%p129) target = $region12
      $region11: #{tpu_custom_call.1} parent=5 // pred_region
        %s133 = ssub.s32 %s17, 1
      $region12: #{tpu_custom_call.1} parent=5 // pred_fallthru
        _
      %p134 = scmp.lt.s32.totalorder %s17, 2
      // Predicated region
      $region13: #{tpu_custom_call.1} parent=5 // pred_check
        %p135 = pneg %p134
      $region14: #{tpu_custom_call.1} parent=5 // pred_check_branch
        %137 = sbr.rel (%p135) target = $region16
      $region15: #{tpu_custom_call.1} parent=5 // pred_region
        // Predicated region
        $region17: #{tpu_custom_call.1} parent=15 // pred_check
          %p138 = pneg %p55
        $region18: #{tpu_custom_call.1} parent=15 // pred_check_branch
          %140 = sbr.rel (%p138) target = $region20
        $region19: #{tpu_custom_call.1} parent=15 // pred_region
          %s141 = sand.u32 %s45, 1
          %s142 = scalar_lea.sflag [#allocation3], %s141
          %s143 = sand.u32 %s45, 1
          %s144 = smul.addr %s143, 16
          %s145 = scalar_lea.vmem [#allocation2], %s144
          %s146 = sadd.s32 %s24, %s25
          %p147 = scmp.lt.s32.totalorder %s146, 0
          %s148 = scalar_select %p147, %s146, 0
          %s149 = smul.u32 2, %s148
          %s151 = ssub.s32 256, 256
          %152 = vsyncadd %s142, %s151
          %s153 = smul.addr %s149, 128
          %s154 = scalar_lea.hbm %s0, %s153
          %s155 = sshll.u32 %s145, 4
          %s156 = int_to_ptr.vmem [resolvable:$true] %s155
          %161 = dma.hbm_to_vmem [thread:$0]  %s154, 256, %s156, %s142, 128, 128, 8
        $region20: #{tpu_custom_call.1} parent=15 // pred_fallthru
          _
        // Predicated region
        $region21: #{tpu_custom_call.1} parent=15 // pred_check
          %p162 = pneg %p87
        $region22: #{tpu_custom_call.1} parent=15 // pred_check_branch
          %164 = sbr.rel (%p162) target = $region24
        $region23: #{tpu_custom_call.1} parent=15 // pred_region
          %s165 = sand.u32 %s77, 1
          %s166 = scalar_lea.sflag [#allocation6], %s165
          %s167 = sand.u32 %s77, 1
          %s168 = smul.addr %s167, 16
          %s169 = scalar_lea.vmem [#allocation5], %s168
          %s170 = sadd.s32 %s24, %s25
          %p171 = scmp.lt.s32.totalorder %s170, 0
          %s172 = scalar_select %p171, %s170, 0
          %s173 = smul.u32 2, %s172
          %s175 = ssub.s32 256, 256
          %176 = vsyncadd %s166, %s175
          %s177 = smul.addr %s173, 128
          %s178 = scalar_lea.hbm %s1, %s177
          %s179 = sshll.u32 %s169, 4
          %s180 = int_to_ptr.vmem [resolvable:$true] %s179
          %185 = dma.hbm_to_vmem [thread:$0]  %s178, 256, %s180, %s166, 128, 128, 8
        $region24: #{tpu_custom_call.1} parent=15 // pred_fallthru
          _
      $region16: #{tpu_custom_call.1} parent=5 // pred_fallthru
        _
      %p186 = scmp.le.s32.totalorder 1, %s17
      %p187 = scmp.lt.s32.totalorder %s17, 3
      %p188 = pnand %p186, %p187
      %p189 = pneg %p188
      // Predicated region
      $region25: #{tpu_custom_call.1} parent=5 // pred_check
        _
      $region26: #{tpu_custom_call.1} parent=5 // pred_check_branch
        %191 = sbr.rel (%p188) target = $region28
      $region27: #{tpu_custom_call.1} parent=5 // pred_region
        %s192 = ssub.s32 %s17, 1
        %s193 = sand.u32 %s48, 1
        %s194 = scalar_lea.sflag [#allocation3], %s193
        %s195 = sand.u32 %s48, 1
        %s196 = smul.addr %s195, 16
        %s197 = scalar_lea.vmem [#allocation2], %s196
        // Predicated region
        $region29: #{tpu_custom_call.1} parent=27 // pred_check
          %p198 = pneg %p61
        $region30: #{tpu_custom_call.1} parent=27 // pred_check_branch
          %200 = sbr.rel (%p198) target = $region32
        $region31: #{tpu_custom_call.1} parent=27 // pred_region
          %201 = dma.done %s194, 256
        $region32: #{tpu_custom_call.1} parent=27 // pred_fallthru
          _
        %s202 = sand.u32 %s80, 1
        %s203 = scalar_lea.sflag [#allocation6], %s202
        %s204 = sand.u32 %s80, 1
        %s205 = smul.addr %s204, 16
        %s206 = scalar_lea.vmem [#allocation5], %s205
        // Predicated region
        $region33: #{tpu_custom_call.1} parent=27 // pred_check
          %p207 = pneg %p93
        $region34: #{tpu_custom_call.1} parent=27 // pred_check_branch
          %209 = sbr.rel (%p207) target = $region36
        $region35: #{tpu_custom_call.1} parent=27 // pred_region
          %210 = dma.done %s203, 256
        $region36: #{tpu_custom_call.1} parent=27 // pred_fallthru
          _
        %s211 = sand.u32 %s48, 1
        %s212 = scalar_lea.sflag [#allocation3], %s211
        %s213 = sand.u32 %s48, 1
        %s214 = smul.addr %s213, 16
        %s215 = scalar_lea.vmem [#allocation2], %s214
        %p216 = pneg %p61
        %p217 = pneg %p58
        %s218 = sand.u32 %s80, 1
        %s219 = scalar_lea.sflag [#allocation6], %s218
        %s220 = sand.u32 %s80, 1
        %s221 = smul.addr %s220, 16
        %s222 = scalar_lea.vmem [#allocation5], %s221
        %p223 = pneg %p93
        %p224 = pneg %p90
        %p225 = pneg %p119
        %p226 = pneg %p116
        %s227 = sand.u32 %s106, 1
        %s228 = scalar_lea.sflag [#allocation4], %s227
        %s229 = sand.u32 %s106, 1
        %s230 = smul.addr %s229, 48
        %s231 = scalar_lea.vmem [#allocation7], %s230
        %s232 = sadd.s32 %s26, %s27
        %p233 = scmp.lt.s32.totalorder %s232, 0
        %s234 = scalar_select %p233, %s232, 0
        %s235 = smul.u32 2, %s234
        %s236 = sadd.s32 %s26, %s27
        %p237 = scmp.lt.s32.totalorder %s236, 0
        %s238 = scalar_select %p237, %s236, 0
        %s239 = smul.u32 2, %s238
        %p240 = scmp.eq.s32.totalorder %s27, 0
        // Predicated region
        $region37: #{tpu_custom_call.1} parent=27 // pred_check
          %p241 = pneg %p240
        $region38: #{tpu_custom_call.1} parent=27 // pred_check_branch
          %243 = sbr.rel (%p241) target = $region40
        $region39: #{tpu_custom_call.1} parent=27 // pred_region
          %244 = vst [vmem:[%s231] sm:$0xff] inf
          %s245 = scalar_lea.vmem %s231, 8 [#allocation7]
          %246 = vst [vmem:[%s245] sm:$0xff] -inf
          %s247 = scalar_lea.vmem %s231, 16 [#allocation7]
          %248 = vst [vmem:[%s247] sm:$0xff] 0.0
          %s249 = scalar_lea.vmem %s231, 24 [#allocation7]
          %250 = vst [vmem:[%s249] sm:$0xff] inf
          %s251 = scalar_lea.vmem %s231, 32 [#allocation7]
          %252 = vst [vmem:[%s251] sm:$0xff] -inf
          %s253 = scalar_lea.vmem %s231, 40 [#allocation7]
          %254 = vst [vmem:[%s253] sm:$0xff] 0.0
        $region40: #{tpu_custom_call.1} parent=27 // pred_fallthru
          _
        %s255 = sadd.s32 %s26, %s27
        %p256 = scmp.lt.s32.totalorder %s255, 1
        // Predicated region
        $region41: #{tpu_custom_call.1} parent=27 // pred_check
          %p257 = pneg %p256
        $region42: #{tpu_custom_call.1} parent=27 // pred_check_branch
          %259 = sbr.rel (%p257) target = $region44
        $region43: #{tpu_custom_call.1} parent=27 // pred_region
          %v260 = vld [vmem:[%s206] sm:$0xff]
          %v261 = vld [vmem:[%s206 + $0x8] sm:$0xff]
          %v262 = vld [vmem:[%s197] sm:$0xff]
          %v263 = vld [vmem:[%s197 + $0x8] sm:$0xff]
          %v264 = vld [vmem:[%s231] sm:$0xff]
          %v265 = vmin.f32 %v260, %v261
          %v266 = vmin.f32 %v264, %v265
          %267 = vst [vmem:[%s231] sm:$0xff] %v266
          %s268 = scalar_lea.vmem %s231, 8 [#allocation7]
          %v269 = vld [vmem:[%s268] sm:$0xff]
          %v270 = vmax.f32 %v260, %v261
          %v271 = vmax.f32 %v269, %v270
          %272 = vst [vmem:[%s268] sm:$0xff] %v271
          %s273 = scalar_lea.vmem %s231, 16 [#allocation7]
          %v274 = vld [vmem:[%s273] sm:$0xff]
          %v275 = vadd.f32 %v260, %v261
          %v276 = vadd.f32 %v274, %v275
          %277 = vst [vmem:[%s273] sm:$0xff] %v276
          %s278 = scalar_lea.vmem %s231, 24 [#allocation7]
          %v279 = vld [vmem:[%s278] sm:$0xff]
          %v280 = vmin.f32 %v262, %v263
          %v281 = vmin.f32 %v279, %v280
          %282 = vst [vmem:[%s278] sm:$0xff] %v281
          %s283 = scalar_lea.vmem %s231, 32 [#allocation7]
          %v284 = vld [vmem:[%s283] sm:$0xff]
          %v285 = vmax.f32 %v262, %v263
          %v286 = vmax.f32 %v284, %v285
          %287 = vst [vmem:[%s283] sm:$0xff] %v286
          %s288 = scalar_lea.vmem %s231, 40 [#allocation7]
          %v289 = vld [vmem:[%s288] sm:$0xff]
          %v290 = vadd.f32 %v262, %v263
          %v291 = vadd.f32 %v289, %v290
          %292 = vst [vmem:[%s288] sm:$0xff] %v291
        $region44: #{tpu_custom_call.1} parent=27 // pred_fallthru
          _
        %s293 = sand.u32 %s106, 1
        %s294 = scalar_lea.sflag [#allocation4], %s293
        %s295 = sand.u32 %s106, 1
        %s296 = smul.addr %s295, 48
        %s297 = scalar_lea.vmem [#allocation7], %s296
        // Predicated region
        $region45: #{tpu_custom_call.1} parent=27 // pred_check
          %p298 = pneg %p116
        $region46: #{tpu_custom_call.1} parent=27 // pred_check_branch
          %300 = sbr.rel (%p298) target = $region48
        $region47: #{tpu_custom_call.1} parent=27 // pred_region
          %s302 = ssub.s32 768, 768
          %303 = vsyncadd %s294, %s302
          %s304 = smul.addr %s26, 6
          %s305 = smul.addr %s304, 128
          %s306 = scalar_lea.hbm %s2, %s305
          %s307 = sshll.u32 %s297, 4
          %s308 = int_to_ptr.vmem [resolvable:$true] %s307
          %313 = dma.vmem_to_hbm [thread:$0]  %s308, 768, %s306, %s294, 128, 128, 8
        $region48: #{tpu_custom_call.1} parent=27 // pred_fallthru
          _
      $region28: #{tpu_custom_call.1} parent=5 // pred_fallthru
        _
      %p314 = scmp.le.s32.totalorder 2, %s17
      // Predicated region
      $region49: #{tpu_custom_call.1} parent=5 // pred_check
        %p315 = pneg %p314
      $region50: #{tpu_custom_call.1} parent=5 // pred_check_branch
        %317 = sbr.rel (%p315) target = $region52
      $region51: #{tpu_custom_call.1} parent=5 // pred_region
        %s318 = ssub.s32 %s17, 2
        // Predicated region
        $region53: #{tpu_custom_call.1} parent=51 // pred_check
          %p319 = pneg %p122
        $region54: #{tpu_custom_call.1} parent=51 // pred_check_branch
          %321 = sbr.rel (%p319) target = $region56
        $region55: #{tpu_custom_call.1} parent=51 // pred_region
          %s322 = sand.u32 %s107, 1
          %s323 = scalar_lea.sflag [#allocation4], %s322
          %s324 = sand.u32 %s107, 1
          %s325 = smul.addr %s324, 48
          %s326 = scalar_lea.vmem [#allocation7], %s325
          %327 = dma.done %s323, 768
        $region56: #{tpu_custom_call.1} parent=51 // pred_fallthru
          _
      $region52: #{tpu_custom_call.1} parent=5 // pred_fallthru
        _
    $region6: #{tpu_custom_call.1} parent=1 // loop_footer
      %s21 = sadd.s32 1, %s17
    $region7: #{tpu_custom_call.1} parent=1 // loop_footer_branch
      %16 = sbr.rel target = $region3
    $region8: #{tpu_custom_call.1} parent=1 // loop_exit
      _
    %328 = vsyncpa [#allocation3], 1
    %s329 = scalar_lea.sflag [#allocation3], 1
    %330 = vsyncpa %s329, 1
    %331 = vsyncpa [#allocation6], 1
    %s332 = scalar_lea.sflag [#allocation6], 1
    %333 = vsyncpa %s332, 1
    %334 = vsyncpa [#allocation4], 1
    %s335 = scalar_lea.sflag [#allocation4], 1
    %336 = vsyncpa %s335, 1

</llo_original>
